<compile_context>
chip_gen: v6e
topology: v6e:2x2x1
jax: 0.10.0
libtpu: 0.0.40
codegen_flags: <defaults>
</compile_context>

<pallas_src>
import functools

import jax
import jax.numpy as jnp
from jax.experimental import pallas as pl
from jax.experimental.pallas import tpu as pltpu


# ----------------------------------------------------------------------------
# Helpers
# ----------------------------------------------------------------------------
def _round_up(x, m):
    return ((x + m - 1) // m) * m


def _pad_rows(arr, n_pad):
    n = arr.shape[0]
    if n_pad == n:
        return arr
    return jnp.pad(arr, ((0, n_pad - n),) + ((0, 0),) * (arr.ndim - 1))


_PP = pltpu.CompilerParams(dimension_semantics=("parallel",))


# ----------------------------------------------------------------------------
# Pallas kernels
# ----------------------------------------------------------------------------
def _feature_conv_kernel(x_ref, m_ref, w_ref, b_ref, psc_ref, psh_ref, o_ref):
    """FeatureConv (BN -> 1x1 conv -> BN -> ReLU) with both BN scales folded into
    the weight, fused with the ParticleNet input BN (bn_fts) and mask multiplies."""
    m = m_ref[...].astype(jnp.float32)                               # (tm, 1)
    x = (x_ref[...].astype(jnp.float32) * m).astype(jnp.bfloat16)
    y = jnp.dot(x, w_ref[...], preferred_element_type=jnp.float32) + b_ref[...]
    y = jnp.maximum(y, 0.0)
    y = (y * psc_ref[...] + psh_ref[...]) * m                        # bn_fts * mask
    o_ref[...] = y.astype(o_ref.dtype)


def _pdist_kernel(x_ref, o_ref):
    """pd[i,j] = 2*x_i.x_j - |x_i|^2 - |x_j|^2 for one batch item (f32 because of
    the 1e9 coord-shift sentinel; never downcast)."""
    x = x_ref[0].astype(jnp.float32)                                 # (P, D)
    xx = x * x
    cdims = (((1,), (1,)), ((), ()))
    inner = jax.lax.dot_general(x, x, cdims,
                                preferred_element_type=jnp.float32)  # (P, P)
    sq_row = jnp.sum(xx, axis=-1, keepdims=True)                     # (P, 1)
    sq_col = jax.lax.dot_general(jnp.ones((1, x.shape[1]), jnp.float32), xx, cdims,
                                 preferred_element_type=jnp.float32)  # (1, P)
    o_ref[0] = 2.0 * inner - sq_row - sq_col


def _edge_conv_kernel(*refs, k, n_extra, has_sc):
    """Fully fused EdgeConv block for ONE batch item.

    refs = [idx (1, K*P, 1) int32, fts (1, P, Cin) bf16, mask (1, P, 1),
            w1n, w1c, b1,                    # first conv (concat folded, BN scale folded)
            (w, b) * n_extra,                # remaining convs (BN scale folded)
            (wsc, bsc) if has_sc,            # shortcut conv (BN scale folded)
            out (1, P, Cout)]
    The neighbour gather is done in-kernel via a one-hot matmul; the edge MLP runs
    batched over all K*P rows; the mean over K is a reshape + sum.
    """
    idx_ref, fts_ref, msk_ref = refs[0], refs[1], refs[2]
    w1n_ref, w1c_ref, b1_ref = refs[3], refs[4], refs[5]
    pos = 6
    layers = []
    for _ in range(n_extra):
        layers.append((refs[pos], refs[pos + 1]))
        pos += 2
    if has_sc:
        wsc_ref, bsc_ref = refs[pos], refs[pos + 1]
        pos += 2
    o_ref = refs[pos]

    fts = fts_ref[0]                                                 # (P, Cin) bf16
    msk = msk_ref[0].astype(jnp.float32)                             # (P, 1)
    idxc = idx_ref[0]                                                # (K*P, 1) int32
    p = fts.shape[0]
    c1 = w1n_ref.shape[1]

    # In-kernel K-neighbour gather as a one-hot matmul (no (K,N,Cin) HBM tensor).
    sel = (idxc == jax.lax.broadcasted_iota(jnp.int32, (k * p, p), 1))
    onehot = sel.astype(jnp.bfloat16)                                # (K*P, P)
    nb = jnp.dot(onehot, fts,
                 preferred_element_type=jnp.float32).astype(jnp.bfloat16)

    # First edge conv (concat folded):  [x, nb-x] @ W  ==  nb @ Wn  +  x @ (Wc - Wn)
    ctr = (jnp.dot(fts, w1c_ref[...], preferred_element_type=jnp.float32)
           + b1_ref[...])                                            # (P, C1)
    h = jnp.dot(nb, w1n_ref[...], preferred_element_type=jnp.float32)
    h = jnp.maximum(h.reshape(k, p, c1) + ctr[None], 0.0).reshape(k * p, c1)

    # Remaining layers of the edge MLP, batched over all K*P rows.
    for (w_ref, b_ref) in layers:
        h = jnp.dot(h.astype(jnp.bfloat16), w_ref[...],
                    preferred_element_type=jnp.float32) + b_ref[...]
        h = jnp.maximum(h, 0.0)
    c_out = h.shape[-1]
    mean = jnp.sum(h.reshape(k, p, c_out), axis=0) * (1.0 / k)       # mean over K

    if has_sc:
        sc = (jnp.dot(fts, wsc_ref[...], preferred_element_type=jnp.float32)
              + bsc_ref[...])
    else:
        sc = fts.astype(jnp.float32)
    o_ref[0] = (jnp.maximum(mean + sc, 0.0) * msk).astype(o_ref.dtype)


def _fusion_pool_kernel(*refs, n_in):
    """Fusion conv (BN scale folded) + ReLU + mask + counts-normalized mean pooling
    for ONE batch item: the (P, 128) fusion activation never leaves VMEM."""
    xs = refs[:n_in]
    mw_ref = refs[n_in]                                              # mask / counts
    ws = refs[n_in + 1: 2 * n_in + 1]
    b_ref = refs[2 * n_in + 1]
    o_ref = refs[2 * n_in + 2]

    y = jnp.dot(xs[0][0], ws[0][...], preferred_element_type=jnp.float32)
    for t in range(1, n_in):
        y = y + jnp.dot(xs[t][0], ws[t][...], preferred_element_type=jnp.float32)
    y = jnp.maximum(y + b_ref[...], 0.0) * mw_ref[0]                 # (P, Cout)
    o_ref[0] = jnp.sum(y, axis=0, keepdims=True)                     # (1, Cout)


def _mlp_head_kernel(*refs, n_layers):
    """All FC layers (Linear [+ReLU]) of the classifier head in one kernel."""
    x = refs[0][...].astype(jnp.float32)
    o_ref = refs[-1]
    for li in range(n_layers):
        w_ref = refs[1 + 2 * li]
        b_ref = refs[2 + 2 * li]
        x = jnp.dot(x.astype(jnp.bfloat16), w_ref[...],
                    preferred_element_type=jnp.float32) + b_ref[...]
        if li < n_layers - 1:
            x = jnp.maximum(x, 0.0)
    o_ref[...] = x


# ----------------------------------------------------------------------------
# Kernel wrappers
# ----------------------------------------------------------------------------
def feature_conv(fts_cl, msk_cl, fp, post_scale, post_shift, row_tile=4096):
    """fts_cl (B,P,Cin) f32, msk_cl (B,P,1) f32 -> (B,P,32) bf16 (masked, bn_fts applied)."""
    b, p, c = fts_cl.shape
    cout = fp['w'].shape[1]
    n = b * p
    x = fts_cl.reshape(n, c)
    m = msk_cl.reshape(n, 1)
    tm = min(row_tile, _round_up(n, 8))
    n_pad = pl.cdiv(n, tm) * tm
    x = _pad_rows(x, n_pad)
    m = _pad_rows(m, n_pad)
    out = pl.pallas_call(
        _feature_conv_kernel,
        out_shape=jax.ShapeDtypeStruct((n_pad, cout), jnp.bfloat16),
        grid=(n_pad // tm,),
        in_specs=[
            pl.BlockSpec((tm, c), lambda i: (i, 0)),
            pl.BlockSpec((tm, 1), lambda i: (i, 0)),
            pl.BlockSpec((c, cout), lambda i: (0, 0)),
            pl.BlockSpec((1, cout), lambda i: (0, 0)),
            pl.BlockSpec((1, cout), lambda i: (0, 0)),
            pl.BlockSpec((1, cout), lambda i: (0, 0)),
        ],
        out_specs=pl.BlockSpec((tm, cout), lambda i: (i, 0)),
        compiler_params=_PP,
    )(x, m, fp['w'], fp['b'], post_scale, post_shift)
    return out[:n].reshape(b, p, cout)


def pairwise_distance(pts):
    """pts (B,P,D) f32 -> (B,P,P) f32, one batch item per grid step."""
    b, p, d = pts.shape
    return pl.pallas_call(
        _pdist_kernel,
        out_shape=jax.ShapeDtypeStruct((b, p, p), jnp.float32),
        grid=(b,),
        in_specs=[pl.BlockSpec((1, p, d), lambda i: (i, 0, 0))],
        out_specs=pl.BlockSpec((1, p, p), lambda i: (i, 0, 0)),
        compiler_params=_PP,
    )(pts)


def edge_conv_block(idx_kp, fts, mask, ec, k):
    """idx_kp (B,K*P,1) int32 local neighbour ids, fts (B,P,Cin) bf16, mask (B,P,1) f32."""
    b, p, cin = fts.shape
    c1 = ec['w1n'].shape[1]
    c_out = ec['layers'][-1][0].shape[1] if ec['layers'] else c1
    has_sc = ec['sc'] is not None

    inputs = [idx_kp, fts, mask, ec['w1n'], ec['w1c'], ec['b1']]
    in_specs = [
        pl.BlockSpec((1, k * p, 1), lambda i: (i, 0, 0)),
        pl.BlockSpec((1, p, cin), lambda i: (i, 0, 0)),
        pl.BlockSpec((1, p, 1), lambda i: (i, 0, 0)),
        pl.BlockSpec((cin, c1), lambda i: (0, 0)),
        pl.BlockSpec((cin, c1), lambda i: (0, 0)),
        pl.BlockSpec((1, c1), lambda i: (0, 0)),
    ]
    for (w, bias) in ec['layers']:
        inputs += [w, bias]
        in_specs += [pl.BlockSpec(w.shape, lambda i: (0, 0)),
                     pl.BlockSpec(bias.shape, lambda i: (0, 0))]
    if has_sc:
        wsc, bsc = ec['sc']
        inputs += [wsc, bsc]
        in_specs += [pl.BlockSpec(wsc.shape, lambda i: (0, 0)),
                     pl.BlockSpec(bsc.shape, lambda i: (0, 0))]

    return pl.pallas_call(
        functools.partial(_edge_conv_kernel, k=k, n_extra=len(ec['layers']),
                          has_sc=has_sc),
        out_shape=jax.ShapeDtypeStruct((b, p, c_out), jnp.bfloat16),
        grid=(b,),
        in_specs=in_specs,
        out_specs=pl.BlockSpec((1, p, c_out), lambda i: (i, 0, 0)),
        compiler_params=_PP,
    )(*inputs)


def fusion_pool(xs_cl, mask_w, ws, bias):
    """xs_cl: list of (B,P,Ci) bf16 edge-conv outputs; mask_w = mask/counts (B,P,1).
    Returns the counts-normalized masked mean of the fusion output, (B, Cout) f32."""
    b, p, _ = xs_cl[0].shape
    cout = ws[0].shape[1]
    n_in = len(xs_cl)
    inputs = list(xs_cl) + [mask_w] + list(ws) + [bias]
    in_specs = ([pl.BlockSpec((1, p, x.shape[-1]), lambda i: (i, 0, 0)) for x in xs_cl]
                + [pl.BlockSpec((1, p, 1), lambda i: (i, 0, 0))]
                + [pl.BlockSpec(w.shape, lambda i: (0, 0)) for w in ws]
                + [pl.BlockSpec((1, cout), lambda i: (0, 0))])
    out = pl.pallas_call(
        functools.partial(_fusion_pool_kernel, n_in=n_in),
        out_shape=jax.ShapeDtypeStruct((b, 1, cout), jnp.float32),
        grid=(b,),
        in_specs=in_specs,
        out_specs=pl.BlockSpec((1, 1, cout), lambda i: (i, 0, 0)),
        compiler_params=_PP,
    )(*inputs)
    return out.reshape(b, cout)


def mlp_head(x, fcs, row_tile=512):
    """x (B,Cin) f32 -> logits (B,num_classes) f32; all FC layers in one kernel."""
    b, cin = x.shape
    cout = fcs[-1][0].shape[1]
    b8 = _round_up(b, 8)
    tb = min(row_tile, b8)
    b_pad = pl.cdiv(b8, tb) * tb
    x = _pad_rows(x, b_pad)
    inputs = [x]
    in_specs = [pl.BlockSpec((tb, cin), lambda i: (i, 0))]
    for (w, bias) in fcs:
        inputs += [w, bias]
        in_specs += [pl.BlockSpec(w.shape, lambda i: (0, 0)),
                     pl.BlockSpec(bias.shape, lambda i: (0, 0))]
    out = pl.pallas_call(
        functools.partial(_mlp_head_kernel, n_layers=len(fcs)),
        out_shape=jax.ShapeDtypeStruct((b_pad, cout), jnp.float32),
        grid=(b_pad // tb,),
        in_specs=in_specs,
        out_specs=pl.BlockSpec((tb, cout), lambda i: (i, 0)),
        compiler_params=_PP,
    )(*inputs)
    return out[:b]


# ----------------------------------------------------------------------------
# Model glue (channels-last)
# ----------------------------------------------------------------------------
def particle_net_forward(p, points, features, mask):
    """points (B,P,D) f32, features (B,P,32) bf16 (FeatureConv+bn_fts, masked), mask (B,P,1)."""
    b, n_pts, _ = points.shape
    k_max = max(p['ks'])
    p_tgt = max(_round_up(n_pts, 8), _round_up(k_max + 1, 8))
    if p_tgt != n_pts:
        pad = ((0, 0), (0, p_tgt - n_pts), (0, 0))
        points = jnp.pad(points, pad)
        features = jnp.pad(features, pad)
        mask = jnp.pad(mask, pad)

    points = points * mask
    coord_shift = jnp.where(mask == 0.0, 1.0e9, 0.0)                 # (B,P,1)
    counts = jnp.maximum(jnp.sum(mask, axis=1), 1.0)                 # (B,1)
    inv_counts = 1.0 / counts

    fts = features
    outputs = []
    for i, (k, ec) in enumerate(zip(p['ks'], p['edge_convs'])):
        pts = (points if i == 0 else fts.astype(jnp.float32)) + coord_shift
        pd = pairwise_distance(pts)                                  # Pallas, f32
        # TODO(synk): exact top-k kept in XLA for parity with torch.topk; at large P
        # consider jax.lax.approx_max_k or an in-kernel iterative k-argmax fused
        # with the pairwise-distance kernel.
        idx = jax.lax.top_k(pd, k + 1)[1][:, :, 1:]                  # (B,P,K) local ids
        idx_kp = jnp.swapaxes(idx, 1, 2).reshape(b, k * p_tgt, 1).astype(jnp.int32)
        fts = edge_conv_block(idx_kp, fts, mask, ec, k)              # fused EdgeConv block
        outputs.append(fts)

    mask_w = mask * inv_counts[:, None, :]                           # mask / counts
    pooled = fusion_pool(outputs, mask_w, p['fusion_ws'], p['fusion_bias'])
    return mlp_head(pooled, p['fcs'])                                # (B,num_classes)


def particle_net_tagger_forward(params, pf_points, pf_features, pf_mask,
                                sv_points, sv_features, sv_mask):
    """Inputs in PyTorch layout (B, C, P); converted to channels-last internally."""
    to_cl = lambda t: jnp.transpose(t, (0, 2, 1)).astype(jnp.float32)
    pf_pts, pf_fts, pf_msk = map(to_cl, (pf_points, pf_features, pf_mask))
    sv_pts, sv_fts, sv_msk = map(to_cl, (sv_points, sv_features, sv_mask))
    pn = params['pn']

    pf_out = feature_conv(pf_fts, pf_msk, params['pf_conv'],
                          pn['bn_fts_scale'], pn['bn_fts_shift'])
    sv_out = feature_conv(sv_fts, sv_msk, params['sv_conv'],
                          pn['bn_fts_scale'], pn['bn_fts_shift'])

    points = jnp.concatenate([pf_pts, sv_pts], axis=1)
    features = jnp.concatenate([pf_out, sv_out], axis=1)             # bf16
    mask = jnp.concatenate([pf_msk, sv_msk], axis=1)
    return particle_net_forward(pn, points, features, mask)


# ----------------------------------------------------------------------------
# Deterministic parameter init (eval-mode BN scales folded into bf16 weights)
# ----------------------------------------------------------------------------
def make_params(key, pf_dims, sv_dims, num_classes,
                conv_params=((7, (32, 32, 32)), (7, (64, 64, 64))),
                fc_params=((128, 0.1),), eps=1e-5):
    keys = iter(jax.random.split(key, 256))
    nk = lambda: next(keys)
    bf16 = lambda w: w.astype(jnp.bfloat16)

    def w_init(cin, cout, s=0.2):
        return s * jax.random.normal(nk(), (cin, cout), jnp.float32)

    def bn_init(c):
        gamma = 1.0 + 0.1 * jax.random.normal(nk(), (c,), jnp.float32)
        beta = 0.1 * jax.random.normal(nk(), (c,), jnp.float32)
        mean = 0.05 * jax.random.normal(nk(), (c,), jnp.float32)
        var = jnp.ones((c,), jnp.float32)
        scale = gamma / jnp.sqrt(var + eps)
        shift = beta - mean * scale
        return scale, shift

    def fconv(cin, cout=32):
        isc, ish = bn_init(cin)                 # input BN
        w = w_init(cin, cout)
        osc, osh = bn_init(cout)                # output BN
        w_fold = (isc[:, None] * w) * osc[None, :]
        b_fold = (ish @ w) * osc + osh
        return dict(w=bf16(w_fold), b=b_fold.reshape(1, cout))

    params = dict(pf_conv=fconv(pf_dims), sv_conv=fconv(sv_dims))

    in_dims = 32
    psc, psh = bn_init(in_dims)                 # bn_fts (cannot fold: ReLU precedes it)
    bn_fts_scale = psc.reshape(1, in_dims)
    bn_fts_shift = psh.reshape(1, in_dims)

    edge_convs, ks = [], []
    for i, (k, channels) in enumerate(conv_params):
        ks.append(k)
        in_feat = in_dims if i == 0 else conv_params[i - 1][1][-1]
        # first conv acts on cat([center, nb - center]); split rows and fold algebraically
        w1_full = w_init(2 * in_feat, channels[0])
        wc, wd = w1_full[:in_feat], w1_full[in_feat:]
        s1, t1 = bn_init(channels[0])
        layers, cprev = [], channels[0]
        for c in channels[1:]:
            w = w_init(cprev, c)
            s, t = bn_init(c)
            layers.append((bf16(w * s[None, :]), t.reshape(1, c)))
            cprev = c
        if in_feat == channels[-1]:
            sc = None
        else:
            scw = w_init(in_feat, channels[-1])
            ssc, tsc = bn_init(channels[-1])
            sc = (bf16(scw * ssc[None, :]), tsc.reshape(1, channels[-1]))
        edge_convs.append(dict(
            w1n=bf16(wd * s1[None, :]),              # applied to neighbours
            w1c=bf16((wc - wd) * s1[None, :]),       # applied to center
            b1=t1.reshape(1, channels[0]),
            layers=layers, sc=sc))

    in_chn = sum(c[-1] for _, c in conv_params)
    out_chn = min(max((in_chn // 128) * 128, 128), 1024)
    fsc, fsh = bn_init(out_chn)
    fusion_w = w_init(in_chn, out_chn) * fsc[None, :]
    fusion_ws, off = [], 0
    for _, c in conv_params:                         # split rows per edge-conv output
        fusion_ws.append(bf16(fusion_w[off:off + c[-1]]))
        off += c[-1]
    fusion_bias = fsh.reshape(1, out_chn)

    fcs, prev = [], out_chn
    for (c, _drop) in fc_params:                     # Dropout: identity in eval mode
        fcs.append((bf16(w_init(prev, c)),
                    0.1 * jax.random.normal(nk(), (1, c), jnp.float32)))
        prev = c
    fcs.append((bf16(w_init(prev, num_classes)),
                0.1 * jax.random.normal(nk(), (1, num_classes), jnp.float32)))

    params['pn'] = dict(bn_fts_scale=bn_fts_scale, bn_fts_shift=bn_fts_shift,
                        ks=ks, edge_convs=edge_convs,
                        fusion_ws=fusion_ws, fusion_bias=fusion_bias, fcs=fcs)
    return params


# ----------------------------------------------------------------------------
# Demo
# ----------------------------------------------------------------------------
if __name__ == "__main__":
    B, Ppf, Psv = 2, 12, 4
    D, pf_dims, sv_dims, num_classes = 2, 4, 3, 5

    key = jax.random.PRNGKey(0)
    k0, k1, k2, k3, kparam = jax.random.split(key, 5)
    pf_points = jax.random.normal(k0, (B, D, Ppf), jnp.float32)
    pf_features = jax.random.normal(k1, (B, pf_dims, Ppf), jnp.float32)
    sv_points = jax.random.normal(k2, (B, D, Psv), jnp.float32)
    sv_features = jax.random.normal(k3, (B, sv_dims, Psv), jnp.float32)

    pf_valid = jnp.array([10, 8])
    sv_valid = jnp.array([3, 2])
    pf_mask = (jnp.arange(Ppf)[None, :] < pf_valid[:, None]).astype(jnp.float32)[:, None, :]
    sv_mask = (jnp.arange(Psv)[None, :] < sv_valid[:, None]).astype(jnp.float32)[:, None, :]

    params = make_params(kparam, pf_dims, sv_dims, num_classes)

    out = particle_net_tagger_forward(params, pf_points, pf_features, pf_mask,
                                      sv_points, sv_features, sv_mask)
    out = jax.block_until_ready(out)
    assert out.shape == (B, num_classes)
    assert bool(jnp.all(jnp.isfinite(out)))
    print("KERNEL_OK")
</pallas_src>

<mosaic_0001>
module attributes {stable_mosaic.version = 11 : i64} {
  func.func @_feature_conv_kernel(%arg0: i32, %arg1: memref<24x4xf32, #tpu.memory_space<vmem>>, %arg2: memref<24x1xf32, #tpu.memory_space<vmem>>, %arg3: memref<4x32xbf16, #tpu.memory_space<vmem>>, %arg4: memref<1x32xf32, #tpu.memory_space<vmem>>, %arg5: memref<1x32xf32, #tpu.memory_space<vmem>>, %arg6: memref<1x32xf32, #tpu.memory_space<vmem>>, %arg7: memref<24x32xbf16, #tpu.memory_space<vmem>>) attributes {dimension_semantics = [#tpu.dimension_semantics<parallel>], iteration_bounds = array<i64: 1>, scalar_prefetch = 0 : i64, scratch_operands = 0 : i64, tpu.core_type = #tpu.core_type<tc>, window_params = [{transform_indices = @transform_0, window_bounds = array<i64: 24, 4>}, {transform_indices = @transform_1, window_bounds = array<i64: 24, 1>}, {pipeline_mode = #tpu.pipeline_mode<synchronous>, transform_indices = @transform_2, window_bounds = array<i64: 4, 32>}, {pipeline_mode = #tpu.pipeline_mode<synchronous>, transform_indices = @transform_3, window_bounds = array<i64: 1, 32>}, {pipeline_mode = #tpu.pipeline_mode<synchronous>, transform_indices = @transform_4, window_bounds = array<i64: 1, 32>}, {pipeline_mode = #tpu.pipeline_mode<synchronous>, transform_indices = @transform_5, window_bounds = array<i64: 1, 32>}, {transform_indices = @transform_6, window_bounds = array<i64: 24, 32>}]} {
    %c0 = arith.constant 0 : index
    %c0_0 = arith.constant 0 : index
    %0 = vector.load %arg2[%c0, %c0_0] : memref<24x1xf32, #tpu.memory_space<vmem>>, vector<24x1xf32>
    %c0_1 = arith.constant 0 : index
    %c0_2 = arith.constant 0 : index
    %1 = vector.load %arg1[%c0_1, %c0_2] : memref<24x4xf32, #tpu.memory_space<vmem>>, vector<24x4xf32>
    %2 = vector.broadcast %0 : vector<24x1xf32> to vector<24x4xf32>
    %3 = arith.mulf %1, %2 : vector<24x4xf32>
    %4 = arith.truncf %3 : vector<24x4xf32> to vector<24x4xbf16>
    %c0_3 = arith.constant 0 : index
    %c0_4 = arith.constant 0 : index
    %5 = vector.load %arg3[%c0_3, %c0_4] : memref<4x32xbf16, #tpu.memory_space<vmem>>, vector<4x32xbf16>
    %cst = arith.constant dense<0.000000e+00> : vector<24x32xf32>
    %6 = tpu.matmul %4, %5, %cst {dimension_numbers = #tpu.dot_dimension_numbers<[1], [0], [0], [1], [0, 0, 1, 1], [], []>} : vector<24x4xbf16>, vector<4x32xbf16>, vector<24x32xf32> -> vector<24x32xf32>
    %c0_5 = arith.constant 0 : index
    %c0_6 = arith.constant 0 : index
    %7 = vector.load %arg4[%c0_5, %c0_6] : memref<1x32xf32, #tpu.memory_space<vmem>>, vector<1x32xf32>
    %8 = vector.broadcast %7 : vector<1x32xf32> to vector<24x32xf32>
    %9 = arith.addf %6, %8 : vector<24x32xf32>
    %cst_7 = arith.constant 0.000000e+00 : f32
    %10 = vector.broadcast %cst_7 : f32 to vector<24x32xf32>
    %11 = arith.maximumf %9, %10 : vector<24x32xf32>
    %c0_8 = arith.constant 0 : index
    %c0_9 = arith.constant 0 : index
    %12 = vector.load %arg5[%c0_8, %c0_9] : memref<1x32xf32, #tpu.memory_space<vmem>>, vector<1x32xf32>
    %13 = vector.broadcast %12 : vector<1x32xf32> to vector<24x32xf32>
    %14 = arith.mulf %11, %13 : vector<24x32xf32>
    %c0_10 = arith.constant 0 : index
    %c0_11 = arith.constant 0 : index
    %15 = vector.load %arg6[%c0_10, %c0_11] : memref<1x32xf32, #tpu.memory_space<vmem>>, vector<1x32xf32>
    %16 = vector.broadcast %15 : vector<1x32xf32> to vector<24x32xf32>
    %17 = arith.addf %14, %16 : vector<24x32xf32>
    %18 = vector.broadcast %0 : vector<24x1xf32> to vector<24x32xf32>
    %19 = arith.mulf %17, %18 : vector<24x32xf32>
    %20 = arith.truncf %19 : vector<24x32xf32> to vector<24x32xbf16>
    %c0_12 = arith.constant 0 : index
    %c0_13 = arith.constant 0 : index
    %21 = vector.load %arg7[%c0_12, %c0_13] : memref<24x32xbf16, #tpu.memory_space<vmem>>, vector<24x32xbf16>
    tpu.vector_store %arg7[%c0_12, %c0_13], %20 {strides = array<i32>} : memref<24x32xbf16, #tpu.memory_space<vmem>>, vector<24x32xbf16>,
    return
  }
  func.func @transform_0(%arg0: i32) -> (i32, i32) {
    %c0_i32 = arith.constant 0 : i32
    %c0_i32_0 = arith.constant 0 : i32
    return %arg0, %c0_i32 : i32, i32
  }
  func.func @transform_1(%arg0: i32) -> (i32, i32) {
    %c0_i32 = arith.constant 0 : i32
    %c0_i32_0 = arith.constant 0 : i32
    return %arg0, %c0_i32 : i32, i32
  }
  func.func @transform_2(%arg0: i32) -> (i32, i32) {
    %c0_i32 = arith.constant 0 : i32
    %c0_i32_0 = arith.constant 0 : i32
    %c0_i32_1 = arith.constant 0 : i32
    return %c0_i32, %c0_i32_0 : i32, i32
  }
  func.func @transform_3(%arg0: i32) -> (i32, i32) {
    %c0_i32 = arith.constant 0 : i32
    %c0_i32_0 = arith.constant 0 : i32
    %c0_i32_1 = arith.constant 0 : i32
    return %c0_i32, %c0_i32_0 : i32, i32
  }
  func.func @transform_4(%arg0: i32) -> (i32, i32) {
    %c0_i32 = arith.constant 0 : i32
    %c0_i32_0 = arith.constant 0 : i32
    %c0_i32_1 = arith.constant 0 : i32
    return %c0_i32, %c0_i32_0 : i32, i32
  }
  func.func @transform_5(%arg0: i32) -> (i32, i32) {
    %c0_i32 = arith.constant 0 : i32
    %c0_i32_0 = arith.constant 0 : i32
    %c0_i32_1 = arith.constant 0 : i32
    return %c0_i32, %c0_i32_0 : i32, i32
  }
  func.func @transform_6(%arg0: i32) -> (i32, i32) {
    %c0_i32 = arith.constant 0 : i32
    %c0_i32_0 = arith.constant 0 : i32
    return %arg0, %c0_i32 : i32, i32
  }
}

</mosaic_0001>

<llo_original>
// kernel: tpu_custom_call.1
$region0: #{tpu_custom_call.1}
  #allocation0 [shape = 'u32[]', space=smem, size = 0x4, offset = 0x4, fixed_abs, tag = 'smem constant byte address 0x4 - core index']
  #allocation1 [shape = 'u32[144,128]{1,0:T(1,128)}', space=vmem, size = 0x12000, scoped, tag = 'internal scratch']
  %s0 = inlined_call_operand.vmem [shape: f32[24,4], index: 0, kind: input, shape index: {}]
  %s1 = inlined_call_operand.vmem [shape: f32[24,1], index: 1, kind: input, shape index: {}]
  %s2 = inlined_call_operand.vmem [shape: bf16[4,32], index: 2, kind: input, shape index: {}]
  %s3 = inlined_call_operand.vmem [shape: f32[1,32], index: 3, kind: input, shape index: {}]
  %s4 = inlined_call_operand.vmem [shape: f32[1,32], index: 4, kind: input, shape index: {}]
  %s5 = inlined_call_operand.vmem [shape: f32[1,32], index: 5, kind: input, shape index: {}]
  %s6 = inlined_call_operand.hbm [shape: bf16[24,32], index: 6, kind: output, shape index: {}]
  %s7 = sld [smem:[#allocation0]]
  $region34: #{tpu_custom_call.1} parent=0
    _
  %s9 = ssub.s32 1, %s7
  %s10 = scalar_select 0, %s9, %s7
  $region1: #{tpu_custom_call.1} parent=0
    #allocation2 [shape = 'u8[6144]{0}', space=vmem, size = 0x1800, scoped, tag = 'output window, operand 0, single buffered']
    #allocation3 [shape = 's32[1]{0}', space=sflag, size = 0x4, scoped, tag = 'scoped memory for tpu_custom_call.1']
    %11 = vsyncpa [#allocation3], 0
    // Predicated region
    $region2: #{tpu_custom_call.1} parent=1 // pred_check
      _
    $region3: #{tpu_custom_call.1} parent=1 // pred_check_branch
      %13 = sbr.rel (0) target = $region5
    $region4: #{tpu_custom_call.1} parent=1 // pred_region
      _
    $region5: #{tpu_custom_call.1} parent=1 // pred_fallthru
      _
    // Predicated region
    $region6: #{tpu_custom_call.1} parent=1 // pred_check
      _
    $region7: #{tpu_custom_call.1} parent=1 // pred_check_branch
      %15 = sbr.rel (0) target = $region9
    $region8: #{tpu_custom_call.1} parent=1 // pred_region
      _
    $region9: #{tpu_custom_call.1} parent=1 // pred_fallthru
      _
    // Predicated region
    $region10: #{tpu_custom_call.1} parent=1 // pred_check
      _
    $region11: #{tpu_custom_call.1} parent=1 // pred_check_branch
      %17 = sbr.rel (0) target = $region13
    $region12: #{tpu_custom_call.1} parent=1 // pred_region
      _
    $region13: #{tpu_custom_call.1} parent=1 // pred_fallthru
      _
    // Predicated region
    $region14: #{tpu_custom_call.1} parent=1 // pred_check
      _
    $region15: #{tpu_custom_call.1} parent=1 // pred_check_branch
      %19 = sbr.rel (0) target = $region17
    $region16: #{tpu_custom_call.1} parent=1 // pred_region
      _
    $region17: #{tpu_custom_call.1} parent=1 // pred_fallthru
      _
    // Predicated region
    $region18: #{tpu_custom_call.1} parent=1 // pred_check
      _
    $region19: #{tpu_custom_call.1} parent=1 // pred_check_branch
      %21 = sbr.rel (0) target = $region21
    $region20: #{tpu_custom_call.1} parent=1 // pred_region
      _
    $region21: #{tpu_custom_call.1} parent=1 // pred_fallthru
      _
    // Predicated region
    $region22: #{tpu_custom_call.1} parent=1 // pred_check
      _
    $region23: #{tpu_custom_call.1} parent=1 // pred_check_branch
      %23 = sbr.rel (0) target = $region25
    $region24: #{tpu_custom_call.1} parent=1 // pred_region
      _
    $region25: #{tpu_custom_call.1} parent=1 // pred_fallthru
      _
    %v25 = vld [vmem:[%s1] sm:$0xff]
    %v26 = vld [vmem:[%s1 + $0x8] sm:$0xff]
    %v27 = vld [vmem:[%s1 + $0x10] sm:$0xff]
    %v28 = vld [vmem:[%s0] sm:$0xff]
    %v29 = vld [vmem:[%s0 + $0x8] sm:$0xff]
    %v30 = vld [vmem:[%s0 + $0x10] sm:$0xff]
    %32 = vset.pattern.permute.xlu0 0
    %33 = vperm.xlu0 %32, %v25
    %v34 = vpop.permute.xlu0 %33
    %37 = vset.pattern.permute.xlu0 0
    %38 = vperm.xlu0 %37, %v26
    %v39 = vpop.permute.xlu0 %38
    %42 = vset.pattern.permute.xlu0 0
    %43 = vperm.xlu0 %42, %v27
    %v44 = vpop.permute.xlu0 %43
    %v46 = vmul.f32 %v28, %v34
    %v47 = vmul.f32 %v29, %v39
    %v48 = vmul.f32 %v30, %v44
    %v49 = vpack.c.bf16 %v47, %v46
    %v50 = vpack.c.bf16 %v48, %v48
    %v51 = vld [vmem:[%s2] sm:$0x3]
    %v52 = vld [vmem:[%s3] sm:$0x1]
    %v54 = vlaneseq
    %v55 = vshrl.u32 %v54, 7
    %v56 = vsub.s32 0, %v55
    %v57 = vrot.slane %v52, %v56
    %vm59 = vcmask 31744
    %v61 = vsel %vm59, %v49, 0
    %v64 = vsel %vm59, %v50, 0
    %vm66 = vcmask 1041408
    %v68 = vsel %vm66, %v51, 0
    %70 = vmatprep.subr.bf16.mxu0 0
    %71 = vmatpush1.bf16.msra.mxu0 0
    %72 = vmatprep.subr.bf16.mxu0 0
    %73 = vmatpush1.bf16.msra.mxu0 0
    %74 = vmatprep.subr.bf16.mxu0 0
    %75 = vmatpush1.bf16.msra.mxu0 0
    %76 = vmatprep.subr.bf16.mxu0 0
    %77 = vmatpush1.bf16.msra.mxu0 0
    %78 = vmatprep.subr.bf16.mxu0 0
    %79 = vmatpush1.bf16.msra.mxu0 0
    %80 = vmatprep.subr.bf16.mxu0 0
    %81 = vmatpush1.bf16.msra.mxu0 0
    %82 = vmatprep.subr.bf16.mxu0 0
    %83 = vmatpush1.bf16.msra.mxu0 0
    %84 = vmatprep.subr.bf16.mxu0 0
    %85 = vmatpush1.bf16.msra.mxu0 %v68
    %86 = vmatprep.subr.bf16.mxu0 0
    %87 = vmatpush2.bf16.msra.mxu0 0
    %88 = vmatprep.subr.bf16.mxu0 0
    %89 = vmatpush2.bf16.msra.mxu0 0
    %90 = vmatprep.subr.bf16.mxu0 0
    %91 = vmatpush2.bf16.msra.mxu0 0
    %92 = vmatprep.subr.bf16.mxu0 0
    %93 = vmatpush2.bf16.msra.mxu0 0
    %94 = vmatprep.subr.bf16.mxu0 0
    %95 = vmatpush2.bf16.msra.mxu0 0
    %96 = vmatprep.subr.bf16.mxu0 0
    %97 = vmatpush2.bf16.msra.mxu0 0
    %98 = vmatprep.subr.bf16.mxu0 0
    %99 = vmatpush2.bf16.msra.mxu0 0
    %100 = vmatprep.subr.bf16.mxu0 0
    %101 = vmatpush2.bf16.msra.mxu0 0
    %102 = vmatprep.mubr.bf16.mxu0 0
    %103 = vmatmul.mubr.bf16.gmra.mxu0 %v61
    %v104 = vpop.f32.mrf.mxu0
    %v105 = vadd.f32 %v57, %v104
    %v106 = vpop.f32.mrf.mxu0
    %v107 = vpop.f32.mrf.mxu0
    %v108 = vadd.f32 %v57, %v107
    %v109 = vpop.f32.mrf.mxu0
    %110 = vmatprep.mubr.bf16.mxu0 0
    %111 = vmatmul.mubr.bf16.gmra.mxu0 %v64
    %v112 = vpop.f32.mrf.mxu0
    %v113 = vadd.f32 %v57, %v112
    %v114 = vpop.f32.mrf.mxu0
    %v115 = vpop.f32.mrf.mxu0
    %v116 = vpop.f32.mrf.mxu0
    %117 = vdwg.mxu0
    %v118 = vmax.f32 %v105, 0.0
    %v119 = vmax.f32 %v108, 0.0
    %v120 = vmax.f32 %v113, 0.0
    %v121 = vld [vmem:[%s4] sm:$0x1]
    %v123 = vlaneseq
    %v124 = vshrl.u32 %v123, 7
    %v125 = vsub.s32 0, %v124
    %v126 = vrot.slane %v121, %v125
    %v128 = vmul.f32 %v118, %v126
    %v129 = vmul.f32 %v119, %v126
    %v130 = vmul.f32 %v120, %v126
    %v131 = vld [vmem:[%s5] sm:$0x1]
    %v133 = vlaneseq
    %v134 = vshrl.u32 %v133, 7
    %v135 = vsub.s32 0, %v134
    %v136 = vrot.slane %v131, %v135
    %v138 = vadd.f32 %v128, %v136
    %v139 = vadd.f32 %v129, %v136
    %v140 = vadd.f32 %v130, %v136
    %v141 = vmul.f32 %v138, %v34
    %v142 = vmul.f32 %v139, %v39
    %v143 = vmul.f32 %v140, %v44
    %v144 = vpack.c.bf16 %v142, %v141
    %v145 = vpack.c.bf16 %v143, %v143
    %v148 = vunpack.c.l.b16 %v144
    %v149 = vunpack.c.h.b16 %v144
    %v150 = vunpack.c.l.b16 %v145
    %v151 = vpack.c.b16 %v148, %v148
    %v152 = vpack.c.b16 %v149, %v149
    %v153 = vpack.c.b16 %v150, %v150
    %vm157 = vcmask 257024
    %158 = vst.msk [vmem:[#allocation2] sm:$0xf] %vm157, %v151
    %159 = vst.msk [vmem:[#allocation2 + $0x4] sm:$0xf] %vm157, %v152
    %160 = vst.msk [vmem:[#allocation2 + $0x8] sm:$0xf] %vm157, %v153
    // Predicated region
    $region26: #{tpu_custom_call.1} parent=1 // pred_check
      _
    $region27: #{tpu_custom_call.1} parent=1 // pred_check_branch
      %162 = sbr.rel (0) target = $region29
    $region28: #{tpu_custom_call.1} parent=1 // pred_region
      %s164 = ssub.s32 192, 192
      %165 = vsyncadd [#allocation3], %s164
      %s166 = sshll.u32 [#allocation2], 4
      %s167 = int_to_ptr.vmem [resolvable:$true] %s166
      %172 = dma.vmem_to_hbm [thread:$0]  %s167, 192, %s6, [#allocation3], 64, 64, 4
    $region29: #{tpu_custom_call.1} parent=1 // pred_fallthru
      _
    // Predicated region
    $region30: #{tpu_custom_call.1} parent=1 // pred_check
      _
    $region31: #{tpu_custom_call.1} parent=1 // pred_check_branch
      %174 = sbr.rel (0) target = $region33
    $region32: #{tpu_custom_call.1} parent=1 // pred_region
      %175 = dma.done [#allocation3], 192
    $region33: #{tpu_custom_call.1} parent=1 // pred_fallthru
      _
    %176 = vsyncpa [#allocation3], 1

</llo_original>
